<compile_context>
chip_gen: v7x
topology: tpu7x:2x2x1
jax: 0.10.0
libtpu: 0.0.40
codegen_flags: <defaults>
</compile_context>

<pallas_src>
import jax
import jax.numpy as jnp
from jax.experimental import pallas as pl
from jax.experimental.pallas import tpu as pltpu

COLOR_SIZE = 15
HIDDEN_DIM = 150
D0 = COLOR_SIZE + HIDDEN_DIM          # 165
D1 = D0 // 2                          # 82
D2 = D0 // 4                          # 41
D3 = D0 // 8                          # 20
D4 = 1

# padded hidden widths (one lane tile each)
P1, P2, P3 = 128, 128, 128
MAX_TB = 2048                         # max batch rows per grid step
_SPLIT_ROWS = 1024                    # batches >= this get >=2 (even) grid steps (v7x dual TC)
VMEM_LIMIT_BYTES = 32 * 1024 * 1024   # explicit budget: safe on v5e/v6e/v7x


def _round_up(x, m):
    return ((x + m - 1) // m) * m


def _cdiv(a, b):
    return -(-a // b)


def _choose_grid(b):
    """Near-divisor batch tiling: (tile_rows, num_steps, padded_rows)."""
    b8 = _round_up(b, 8)
    g = _cdiv(b8, MAX_TB)
    if b8 >= _SPLIT_ROWS:
        # >=2 steps, even count: lets ("parallel",) shard across both v7x TCs
        # without a 1-step load imbalance.  Harmless (one extra cheap step) on
        # single-TC v5e/v6e.
        g = max(g, 2)
        if g % 2:
            g += 1
    tb = _round_up(_cdiv(b8, g), 8)
    return tb, g, tb * g


def _disc_kernel(c_ref, t_ref,
                 w1a_ref, w1b_ref, b1_ref,
                 w2_ref, b2_ref,
                 w3_ref, b3_ref,
                 w4_ref, b4_ref,
                 o_ref):
    """One batch-tile of the 4-layer MLP + sigmoid, entirely in VMEM.

    Matmul operands are bf16 (MXU-native), accumulation and all elementwise
    math (bias, ReLU, final reduce, sigmoid) stay f32.
    """
    c = c_ref[...].astype(jnp.bfloat16)                       # (TB, 15)
    t = t_ref[...].astype(jnp.bfloat16)                       # (TB, 150)

    # layer 1: fused concat -> split matmul (color @ W1a + text @ W1b)
    h = (jnp.dot(c, w1a_ref[...], preferred_element_type=jnp.float32)
         + jnp.dot(t, w1b_ref[...], preferred_element_type=jnp.float32)
         + b1_ref[...])
    h = jnp.maximum(h, 0.0)                                   # (TB, P1) f32

    h = jnp.dot(h.astype(jnp.bfloat16), w2_ref[...],
                preferred_element_type=jnp.float32) + b2_ref[...]
    h = jnp.maximum(h, 0.0)                                   # (TB, P2) f32

    h = jnp.dot(h.astype(jnp.bfloat16), w3_ref[...],
                preferred_element_type=jnp.float32) + b3_ref[...]
    h = jnp.maximum(h, 0.0)                                   # (TB, P3) f32

    # layer 4 (20 -> 1): VPU multiply + XLU lane reduction, no padded MXU op.
    logits = jnp.sum(h * w4_ref[...], axis=-1, keepdims=True) + b4_ref[...]
    o_ref[...] = jax.nn.sigmoid(logits)                       # (TB, 1)


def prepare_params(params):
    """One-time padding / splitting / bf16-casting of the raw weights."""
    w1, b1, w2, b2, w3, b3, w4, b4 = params

    def pad2(w, rows, cols, dtype):
        z = jnp.zeros((rows, cols), dtype)
        return z.at[:w.shape[0], :w.shape[1]].set(w.astype(dtype))

    def pad_row(v, cols, dtype):
        z = jnp.zeros((1, cols), dtype)
        return z.at[0, :v.shape[0]].set(v.astype(dtype))

    w1a = pad2(w1[:COLOR_SIZE], COLOR_SIZE, P1, jnp.bfloat16)   # (15, 128) bf16
    w1b = pad2(w1[COLOR_SIZE:], HIDDEN_DIM, P1, jnp.bfloat16)   # (150, 128) bf16
    b1_p = pad_row(b1, P1, jnp.float32)
    w2_p = pad2(w2, P1, P2, jnp.bfloat16)                       # (128, 128) bf16
    b2_p = pad_row(b2, P2, jnp.float32)
    w3_p = pad2(w3, P2, P3, jnp.bfloat16)                       # (128, 128) bf16
    b3_p = pad_row(b3, P3, jnp.float32)
    w4_row = pad_row(w4[:, 0], P3, jnp.float32)                 # (1, 128) f32 row
    b4_p = jnp.reshape(b4, (1, 1)).astype(jnp.float32)
    return (w1a, w1b, b1_p, w2_p, b2_p, w3_p, b3_p, w4_row, b4_p)


@jax.jit
def discriminator_forward(color, text, padded_params):
    """color: (B, 15), text: (B, 150) -> (B,) f32 probabilities."""
    w1a, w1b, b1_p, w2_p, b2_p, w3_p, b3_p, w4_row, b4_p = padded_params
    b = color.shape[0]
    tb, g, b_pad = _choose_grid(b)

    c = color.astype(jnp.float32)
    t = text.astype(jnp.float32)
    if b_pad != b:
        # Row-only pad for the batch remainder (tiny: < 8*g rows).
        # TODO(synk): drop this copy and rely on Pallas partial boundary blocks
        # on the batch axis once validated on all target generations.
        c = jnp.pad(c, ((0, b_pad - b), (0, 0)))
        t = jnp.pad(t, ((0, b_pad - b), (0, 0)))

    full = lambda shape: pl.BlockSpec(shape, lambda i: (0, 0))

    weight_bytes = (2 * (COLOR_SIZE * P1 + HIDDEN_DIM * P1 + P1 * P2 + P2 * P3)
                    + 4 * (P1 + P2 + P3 + P3 + 1))
    cost = pl.CostEstimate(
        flops=2 * b_pad * (COLOR_SIZE * P1 + HIDDEN_DIM * P1
                           + P1 * P2 + P2 * P3 + P3),
        transcendentals=b_pad,
        bytes_accessed=4 * b_pad * (COLOR_SIZE + HIDDEN_DIM + 1) + weight_bytes,
    )

    out = pl.pallas_call(
        _disc_kernel,
        out_shape=jax.ShapeDtypeStruct((b_pad, 1), jnp.float32),
        grid_spec=pltpu.PrefetchScalarGridSpec(
            num_scalar_prefetch=0,
            grid=(g,),
            in_specs=[
                pl.BlockSpec((tb, COLOR_SIZE), lambda i: (i, 0)),   # color tile
                pl.BlockSpec((tb, HIDDEN_DIM), lambda i: (i, 0)),   # text tile
                full((COLOR_SIZE, P1)), full((HIDDEN_DIM, P1)), full((1, P1)),  # L1
                full((P1, P2)), full((1, P2)),                                  # L2
                full((P2, P3)), full((1, P3)),                                  # L3
                full((1, P3)), full((1, 1)),                                    # L4
            ],
            out_specs=pl.BlockSpec((tb, 1), lambda i: (i, 0)),
        ),
        compiler_params=pltpu.CompilerParams(
            dimension_semantics=("parallel",),
            vmem_limit_bytes=VMEM_LIMIT_BYTES,
        ),
        cost_estimate=cost,
    )(c, t, w1a, w1b, b1_p, w2_p, b2_p, w3_p, b3_p, w4_row, b4_p)

    return out[:b, 0]                                         # squeeze(1)


def init_params(key):
    """Deterministic init mirroring nn.Linear default (U[-1/sqrt(fan_in), +])."""
    dims = [(D0, D1), (D1, D2), (D2, D3), (D3, D4)]
    params = []
    for fan_in, fan_out in dims:
        kw, kb, key = jax.random.split(key, 3)
        bound = 1.0 / (fan_in ** 0.5)
        w = jax.random.uniform(kw, (fan_in, fan_out), jnp.float32, -bound, bound)
        bvec = jax.random.uniform(kb, (fan_out,), jnp.float32, -bound, bound)
        params += [w, bvec]
    return tuple(params)


def _reference_forward(color, text, params):
    """Plain-JAX f32 reference for correctness checking."""
    w1, b1, w2, b2, w3, b3, w4, b4 = params
    h = jnp.concatenate([color, text], axis=1)
    h = jnp.maximum(h @ w1 + b1, 0.0)
    h = jnp.maximum(h @ w2 + b2, 0.0)
    h = jnp.maximum(h @ w3 + b3, 0.0)
    return jax.nn.sigmoid(h @ w4 + b4)[:, 0]


if __name__ == "__main__":
    key = jax.random.PRNGKey(0)
    kc, kt, kp = jax.random.split(key, 3)

    B = 8
    color = jax.random.normal(kc, (B, COLOR_SIZE), jnp.float32)
    text = jax.random.normal(kt, (B, HIDDEN_DIM), jnp.float32)
    params = init_params(kp)
    padded_params = prepare_params(params)      # one-time padding / bf16 cast

    out = discriminator_forward(color, text, padded_params)
    out = jax.block_until_ready(out)

    ref = _reference_forward(color, text, params)
    assert out.shape == (B,)
    # bf16 MXU operands: tolerance relaxed vs. the f32 reference.
    assert jnp.allclose(out, ref, atol=2e-2, rtol=2e-2), (out, ref)

    print("KERNEL_OK")
</pallas_src>

<mosaic_0001>
module attributes {stable_mosaic.version = 11 : i64} {
  func.func @_disc_kernel(%arg0: i32, %arg1: memref<8x15xf32, #tpu.memory_space<vmem>>, %arg2: memref<8x150xf32, #tpu.memory_space<vmem>>, %arg3: memref<15x128xbf16, #tpu.memory_space<vmem>>, %arg4: memref<150x128xbf16, #tpu.memory_space<vmem>>, %arg5: memref<1x128xf32, #tpu.memory_space<vmem>>, %arg6: memref<128x128xbf16, #tpu.memory_space<vmem>>, %arg7: memref<1x128xf32, #tpu.memory_space<vmem>>, %arg8: memref<128x128xbf16, #tpu.memory_space<vmem>>, %arg9: memref<1x128xf32, #tpu.memory_space<vmem>>, %arg10: memref<1x128xf32, #tpu.memory_space<vmem>>, %arg11: memref<1x1xf32, #tpu.memory_space<vmem>>, %arg12: memref<8x1xf32, #tpu.memory_space<vmem>>) attributes {dimension_semantics = [#tpu.dimension_semantics<parallel>], iteration_bounds = array<i64: 1>, scalar_prefetch = 0 : i64, scratch_operands = 0 : i64, tpu.core_type = #tpu.core_type<tc>, window_params = [{transform_indices = @transform_0, window_bounds = array<i64: 8, 15>}, {transform_indices = @transform_1, window_bounds = array<i64: 8, 150>}, {pipeline_mode = #tpu.pipeline_mode<synchronous>, transform_indices = @transform_2, window_bounds = array<i64: 15, 128>}, {pipeline_mode = #tpu.pipeline_mode<synchronous>, transform_indices = @transform_3, window_bounds = array<i64: 150, 128>}, {pipeline_mode = #tpu.pipeline_mode<synchronous>, transform_indices = @transform_4, window_bounds = array<i64: 1, 128>}, {pipeline_mode = #tpu.pipeline_mode<synchronous>, transform_indices = @transform_5, window_bounds = array<i64: 128, 128>}, {pipeline_mode = #tpu.pipeline_mode<synchronous>, transform_indices = @transform_6, window_bounds = array<i64: 1, 128>}, {pipeline_mode = #tpu.pipeline_mode<synchronous>, transform_indices = @transform_7, window_bounds = array<i64: 128, 128>}, {pipeline_mode = #tpu.pipeline_mode<synchronous>, transform_indices = @transform_8, window_bounds = array<i64: 1, 128>}, {pipeline_mode = #tpu.pipeline_mode<synchronous>, transform_indices = @transform_9, window_bounds = array<i64: 1, 128>}, {pipeline_mode = #tpu.pipeline_mode<synchronous>, transform_indices = @transform_10, window_bounds = array<i64: 1, 1>}, {transform_indices = @transform_11, window_bounds = array<i64: 8, 1>}]} {
    %c0 = arith.constant 0 : index
    %c0_0 = arith.constant 0 : index
    %0 = vector.load %arg1[%c0, %c0_0] : memref<8x15xf32, #tpu.memory_space<vmem>>, vector<8x15xf32>
    %1 = arith.truncf %0 : vector<8x15xf32> to vector<8x15xbf16>
    %c0_1 = arith.constant 0 : index
    %c0_2 = arith.constant 0 : index
    %2 = vector.load %arg2[%c0_1, %c0_2] : memref<8x150xf32, #tpu.memory_space<vmem>>, vector<8x150xf32>
    %3 = arith.truncf %2 : vector<8x150xf32> to vector<8x150xbf16>
    %c0_3 = arith.constant 0 : index
    %c0_4 = arith.constant 0 : index
    %4 = vector.load %arg3[%c0_3, %c0_4] : memref<15x128xbf16, #tpu.memory_space<vmem>>, vector<15x128xbf16>
    %cst = arith.constant dense<0.000000e+00> : vector<8x128xf32>
    %5 = tpu.matmul %1, %4, %cst {dimension_numbers = #tpu.dot_dimension_numbers<[1], [0], [0], [1], [0, 0, 1, 1], [], []>} : vector<8x15xbf16>, vector<15x128xbf16>, vector<8x128xf32> -> vector<8x128xf32>
    %c0_5 = arith.constant 0 : index
    %c0_6 = arith.constant 0 : index
    %6 = vector.load %arg4[%c0_5, %c0_6] : memref<150x128xbf16, #tpu.memory_space<vmem>>, vector<150x128xbf16>
    %cst_7 = arith.constant dense<0.000000e+00> : vector<8x128xf32>
    %7 = tpu.matmul %3, %6, %cst_7 {dimension_numbers = #tpu.dot_dimension_numbers<[1], [0], [0], [1], [0, 0, 1, 1], [], []>} : vector<8x150xbf16>, vector<150x128xbf16>, vector<8x128xf32> -> vector<8x128xf32>
    %8 = arith.addf %5, %7 : vector<8x128xf32>
    %c0_8 = arith.constant 0 : index
    %c0_9 = arith.constant 0 : index
    %9 = vector.load %arg5[%c0_8, %c0_9] : memref<1x128xf32, #tpu.memory_space<vmem>>, vector<1x128xf32>
    %10 = vector.broadcast %9 : vector<1x128xf32> to vector<8x128xf32>
    %11 = arith.addf %8, %10 : vector<8x128xf32>
    %cst_10 = arith.constant 0.000000e+00 : f32
    %12 = vector.broadcast %cst_10 : f32 to vector<8x128xf32>
    %13 = arith.maximumf %11, %12 : vector<8x128xf32>
    %14 = arith.truncf %13 : vector<8x128xf32> to vector<8x128xbf16>
    %c0_11 = arith.constant 0 : index
    %c0_12 = arith.constant 0 : index
    %15 = vector.load %arg6[%c0_11, %c0_12] : memref<128x128xbf16, #tpu.memory_space<vmem>>, vector<128x128xbf16>
    %cst_13 = arith.constant dense<0.000000e+00> : vector<8x128xf32>
    %16 = tpu.matmul %14, %15, %cst_13 {dimension_numbers = #tpu.dot_dimension_numbers<[1], [0], [0], [1], [0, 0, 1, 1], [], []>} : vector<8x128xbf16>, vector<128x128xbf16>, vector<8x128xf32> -> vector<8x128xf32>
    %c0_14 = arith.constant 0 : index
    %c0_15 = arith.constant 0 : index
    %17 = vector.load %arg7[%c0_14, %c0_15] : memref<1x128xf32, #tpu.memory_space<vmem>>, vector<1x128xf32>
    %18 = vector.broadcast %17 : vector<1x128xf32> to vector<8x128xf32>
    %19 = arith.addf %16, %18 : vector<8x128xf32>
    %cst_16 = arith.constant 0.000000e+00 : f32
    %20 = vector.broadcast %cst_16 : f32 to vector<8x128xf32>
    %21 = arith.maximumf %19, %20 : vector<8x128xf32>
    %22 = arith.truncf %21 : vector<8x128xf32> to vector<8x128xbf16>
    %c0_17 = arith.constant 0 : index
    %c0_18 = arith.constant 0 : index
    %23 = vector.load %arg8[%c0_17, %c0_18] : memref<128x128xbf16, #tpu.memory_space<vmem>>, vector<128x128xbf16>
    %cst_19 = arith.constant dense<0.000000e+00> : vector<8x128xf32>
    %24 = tpu.matmul %22, %23, %cst_19 {dimension_numbers = #tpu.dot_dimension_numbers<[1], [0], [0], [1], [0, 0, 1, 1], [], []>} : vector<8x128xbf16>, vector<128x128xbf16>, vector<8x128xf32> -> vector<8x128xf32>
    %c0_20 = arith.constant 0 : index
    %c0_21 = arith.constant 0 : index
    %25 = vector.load %arg9[%c0_20, %c0_21] : memref<1x128xf32, #tpu.memory_space<vmem>>, vector<1x128xf32>
    %26 = vector.broadcast %25 : vector<1x128xf32> to vector<8x128xf32>
    %27 = arith.addf %24, %26 : vector<8x128xf32>
    %cst_22 = arith.constant 0.000000e+00 : f32
    %28 = vector.broadcast %cst_22 : f32 to vector<8x128xf32>
    %29 = arith.maximumf %27, %28 : vector<8x128xf32>
    %c0_23 = arith.constant 0 : index
    %c0_24 = arith.constant 0 : index
    %30 = vector.load %arg10[%c0_23, %c0_24] : memref<1x128xf32, #tpu.memory_space<vmem>>, vector<1x128xf32>
    %31 = vector.broadcast %30 : vector<1x128xf32> to vector<8x128xf32>
    %32 = arith.mulf %29, %31 : vector<8x128xf32>
    %cst_25 = arith.constant dense<0.000000e+00> : vector<8xf32>
    %33 = vector.multi_reduction <add>, %32, %cst_25 [1] : vector<8x128xf32> to vector<8xf32>
    %34 = vector.shape_cast %33 : vector<8xf32> to vector<8x1xf32>
    %c0_26 = arith.constant 0 : index
    %c0_27 = arith.constant 0 : index
    %35 = vector.load %arg11[%c0_26, %c0_27] : memref<1x1xf32, #tpu.memory_space<vmem>>, vector<1x1xf32>
    %36 = vector.broadcast %35 : vector<1x1xf32> to vector<8x1xf32>
    %37 = arith.addf %34, %36 : vector<8x1xf32>
    %38 = arith.negf %37 : vector<8x1xf32>
    %39 = math.exp %38 : vector<8x1xf32>
    %cst_28 = arith.constant 1.000000e+00 : f32
    %40 = vector.broadcast %cst_28 : f32 to vector<8x1xf32>
    %41 = arith.addf %40, %39 : vector<8x1xf32>
    %42 = arith.divf %40, %41 : vector<8x1xf32>
    %c0_29 = arith.constant 0 : index
    %c0_30 = arith.constant 0 : index
    %43 = vector.load %arg12[%c0_29, %c0_30] : memref<8x1xf32, #tpu.memory_space<vmem>>, vector<8x1xf32>
    tpu.vector_store %arg12[%c0_29, %c0_30], %42 {strides = array<i32>} : memref<8x1xf32, #tpu.memory_space<vmem>>, vector<8x1xf32>,
    return
  }
  func.func @transform_0(%arg0: i32) -> (i32, i32) {
    %c0_i32 = arith.constant 0 : i32
    %c0_i32_0 = arith.constant 0 : i32
    return %arg0, %c0_i32 : i32, i32
  }
  func.func @transform_1(%arg0: i32) -> (i32, i32) {
    %c0_i32 = arith.constant 0 : i32
    %c0_i32_0 = arith.constant 0 : i32
    return %arg0, %c0_i32 : i32, i32
  }
  func.func @transform_2(%arg0: i32) -> (i32, i32) {
    %c0_i32 = arith.constant 0 : i32
    %c0_i32_0 = arith.constant 0 : i32
    %c0_i32_1 = arith.constant 0 : i32
    return %c0_i32, %c0_i32_0 : i32, i32
  }
  func.func @transform_3(%arg0: i32) -> (i32, i32) {
    %c0_i32 = arith.constant 0 : i32
    %c0_i32_0 = arith.constant 0 : i32
    %c0_i32_1 = arith.constant 0 : i32
    return %c0_i32, %c0_i32_0 : i32, i32
  }
  func.func @transform_4(%arg0: i32) -> (i32, i32) {
    %c0_i32 = arith.constant 0 : i32
    %c0_i32_0 = arith.constant 0 : i32
    %c0_i32_1 = arith.constant 0 : i32
    return %c0_i32, %c0_i32_0 : i32, i32
  }
  func.func @transform_5(%arg0: i32) -> (i32, i32) {
    %c0_i32 = arith.constant 0 : i32
    %c0_i32_0 = arith.constant 0 : i32
    %c0_i32_1 = arith.constant 0 : i32
    return %c0_i32, %c0_i32_0 : i32, i32
  }
  func.func @transform_6(%arg0: i32) -> (i32, i32) {
    %c0_i32 = arith.constant 0 : i32
    %c0_i32_0 = arith.constant 0 : i32
    %c0_i32_1 = arith.constant 0 : i32
    return %c0_i32, %c0_i32_0 : i32, i32
  }
  func.func @transform_7(%arg0: i32) -> (i32, i32) {
    %c0_i32 = arith.constant 0 : i32
    %c0_i32_0 = arith.constant 0 : i32
    %c0_i32_1 = arith.constant 0 : i32
    return %c0_i32, %c0_i32_0 : i32, i32
  }
  func.func @transform_8(%arg0: i32) -> (i32, i32) {
    %c0_i32 = arith.constant 0 : i32
    %c0_i32_0 = arith.constant 0 : i32
    %c0_i32_1 = arith.constant 0 : i32
    return %c0_i32, %c0_i32_0 : i32, i32
  }
  func.func @transform_9(%arg0: i32) -> (i32, i32) {
    %c0_i32 = arith.constant 0 : i32
    %c0_i32_0 = arith.constant 0 : i32
    %c0_i32_1 = arith.constant 0 : i32
    return %c0_i32, %c0_i32_0 : i32, i32
  }
  func.func @transform_10(%arg0: i32) -> (i32, i32) {
    %c0_i32 = arith.constant 0 : i32
    %c0_i32_0 = arith.constant 0 : i32
    %c0_i32_1 = arith.constant 0 : i32
    return %c0_i32, %c0_i32_0 : i32, i32
  }
  func.func @transform_11(%arg0: i32) -> (i32, i32) {
    %c0_i32 = arith.constant 0 : i32
    %c0_i32_0 = arith.constant 0 : i32
    return %arg0, %c0_i32 : i32, i32
  }
}

</mosaic_0001>

<llo_original>
// kernel: discriminator_forward.1
$region0: #{discriminator_forward.1}
  #allocation0 [shape = 'u32[]', space=smem, size = 0x4, offset = 0x4, fixed_abs, tag = 'smem constant byte address 0x4 - core index']
  #allocation1 [shape = 'u32[144,128]{1,0:T(1,128)}', space=vmem, size = 0x12000, scoped, tag = 'internal scratch']
  #allocation2 [shape = 'f32[1,1]{1,0:T(1,128)S(1)}', space=vmem, size = 0x200, scoped, tag = 'scoped memory for discriminator_forward.1']
  %s0 = inlined_call_operand.hbm [shape: f32[8,15], index: 0, kind: input, shape index: {}]
  %s1 = inlined_call_operand.hbm [shape: f32[8,150], index: 1, kind: input, shape index: {}]
  %s2 = inlined_call_operand.vmem [shape: bf16[15,128], index: 2, kind: input, shape index: {}]
  %s3 = inlined_call_operand.hbm [shape: bf16[150,128], index: 3, kind: input, shape index: {}]
  %s4 = inlined_call_operand.vmem [shape: f32[1,128], index: 4, kind: input, shape index: {}]
  %s5 = inlined_call_operand.hbm [shape: bf16[128,128], index: 5, kind: input, shape index: {}]
  %s6 = inlined_call_operand.vmem [shape: f32[1,128], index: 6, kind: input, shape index: {}]
  %s7 = inlined_call_operand.hbm [shape: bf16[128,128], index: 7, kind: input, shape index: {}]
  %s8 = inlined_call_operand.vmem [shape: f32[1,128], index: 8, kind: input, shape index: {}]
  %s9 = inlined_call_operand.vmem [shape: f32[1,128], index: 9, kind: input, shape index: {}]
  %s10 = inlined_call_operand.<no memory space> [shape: f32[1,1], index: 10, kind: input, shape index: {}]
  %s11 = inlined_call_operand.vmem [shape: f32[8,1], index: 11, kind: output, shape index: {}]
  %s12 = sld [smem:[#allocation0]]
  $region74: #{discriminator_forward.1} parent=0
    _
  %s14 = ssub.s32 1, %s12
  %s15 = scalar_select 0, %s14, %s12
  %v16 = vstv %s10
  %17 = vst [vmem:[#allocation2] sm:$0x1] %v16
  $region1: #{discriminator_forward.1} parent=0
    #allocation3 [shape = 'u8[4096]{0}', space=vmem, size = 0x1000, scoped, tag = 'input window, operand 0, single buffered']
    #allocation4 [shape = 's32[1]{0}', space=sflag, size = 0x4, scoped, tag = 'scoped memory for discriminator_forward.1']
    #allocation5 [shape = 'u8[8192]{0}', space=vmem, size = 0x2000, scoped, tag = 'input window, operand 1, single buffered']
    #allocation6 [shape = 's32[1]{0}', space=sflag, size = 0x4, scoped, tag = 'scoped memory for discriminator_forward.1']
    #allocation7 [shape = 'u8[38912]{0}', space=vmem, size = 0x9800, scoped, tag = 'input window, operand 3, single buffered']
    #allocation8 [shape = 'u8[32768]{0}', space=vmem, size = 0x8000, scoped, tag = 'input window, operand 5, single buffered']
    #allocation9 [shape = 's32[1]{0}', space=sflag, size = 0x4, scoped, tag = 'scoped memory for discriminator_forward.1']
    #allocation10 [shape = 'u8[32768]{0}', space=vmem, size = 0x8000, scoped, tag = 'input window, operand 7, single buffered']
    %18 = vsyncpa [#allocation4], 0
    %19 = vsyncpa [#allocation6], 0
    %20 = vsyncpa [#allocation9], 0
    // Predicated region
    $region2: #{discriminator_forward.1} parent=1 // pred_check
      _
    $region3: #{discriminator_forward.1} parent=1 // pred_check_branch
      %22 = sbr.rel (0) target = $region5
    $region4: #{discriminator_forward.1} parent=1 // pred_region
      %s24 = ssub.s32 128, 128
      %25 = vsyncadd [#allocation4], %s24
      %s27 = sshll.u32 [#allocation3], 4
      %s28 = int_to_ptr.vmem [resolvable:$true] %s27
      %30 = dma.hbm_to_vmem [thread:$0]  %s0, 128, %s28, [#allocation4]
    $region5: #{discriminator_forward.1} parent=1 // pred_fallthru
      _
    // Predicated region
    $region6: #{discriminator_forward.1} parent=1 // pred_check
      _
    $region7: #{discriminator_forward.1} parent=1 // pred_check_branch
      %32 = sbr.rel (0) target = $region9
    $region8: #{discriminator_forward.1} parent=1 // pred_region
      %s34 = ssub.s32 256, 256
      %35 = vsyncadd [#allocation6], %s34
      %s37 = sshll.u32 [#allocation5], 4
      %s38 = int_to_ptr.vmem [resolvable:$true] %s37
      %40 = dma.hbm_to_vmem [thread:$0]  %s1, 256, %s38, [#allocation6]
    $region9: #{discriminator_forward.1} parent=1 // pred_fallthru
      _
    // Predicated region
    $region10: #{discriminator_forward.1} parent=1 // pred_check
      _
    $region11: #{discriminator_forward.1} parent=1 // pred_check_branch
      %42 = sbr.rel (0) target = $region13
    $region12: #{discriminator_forward.1} parent=1 // pred_region
      _
    $region13: #{discriminator_forward.1} parent=1 // pred_fallthru
      _
    // Predicated region
    $region14: #{discriminator_forward.1} parent=1 // pred_check
      _
    $region15: #{discriminator_forward.1} parent=1 // pred_check_branch
      %44 = sbr.rel (0) target = $region17
    $region16: #{discriminator_forward.1} parent=1 // pred_region
      %s46 = ssub.s32 1216, 1216
      %47 = vsyncadd [#allocation6], %s46
      %s48 = sshll.u32 [#allocation7], 4
      %s49 = int_to_ptr.vmem [resolvable:$true] %s48
      %54 = dma.hbm_to_vmem [thread:$0]  %s3, 1216, %s49, [#allocation6], 64, 64, 4
    $region17: #{discriminator_forward.1} parent=1 // pred_fallthru
      _
    // Predicated region
    $region18: #{discriminator_forward.1} parent=1 // pred_check
      _
    $region19: #{discriminator_forward.1} parent=1 // pred_check_branch
      %56 = sbr.rel (0) target = $region21
    $region20: #{discriminator_forward.1} parent=1 // pred_region
      _
    $region21: #{discriminator_forward.1} parent=1 // pred_fallthru
      _
    // Predicated region
    $region22: #{discriminator_forward.1} parent=1 // pred_check
      _
    $region23: #{discriminator_forward.1} parent=1 // pred_check_branch
      %58 = sbr.rel (0) target = $region25
    $region24: #{discriminator_forward.1} parent=1 // pred_region
      %s60 = ssub.s32 1024, 1024
      %61 = vsyncadd [#allocation9], %s60
      %s62 = sshll.u32 [#allocation8], 4
      %s63 = int_to_ptr.vmem [resolvable:$true] %s62
      %68 = dma.hbm_to_vmem [thread:$0]  %s5, 1024, %s63, [#allocation9], 64, 64, 4
    $region25: #{discriminator_forward.1} parent=1 // pred_fallthru
      _
    // Predicated region
    $region26: #{discriminator_forward.1} parent=1 // pred_check
      _
    $region27: #{discriminator_forward.1} parent=1 // pred_check_branch
      %70 = sbr.rel (0) target = $region29
    $region28: #{discriminator_forward.1} parent=1 // pred_region
      _
    $region29: #{discriminator_forward.1} parent=1 // pred_fallthru
      _
    // Predicated region
    $region30: #{discriminator_forward.1} parent=1 // pred_check
      _
    $region31: #{discriminator_forward.1} parent=1 // pred_check_branch
      %72 = sbr.rel (0) target = $region33
    $region32: #{discriminator_forward.1} parent=1 // pred_region
      %s74 = ssub.s32 1024, 1024
      %75 = vsyncadd [#allocation9], %s74
      %s76 = sshll.u32 [#allocation10], 4
      %s77 = int_to_ptr.vmem [resolvable:$true] %s76
      %82 = dma.hbm_to_vmem [thread:$0]  %s7, 1024, %s77, [#allocation9], 64, 64, 4
    $region33: #{discriminator_forward.1} parent=1 // pred_fallthru
      _
    // Predicated region
    $region34: #{discriminator_forward.1} parent=1 // pred_check
      _
    $region35: #{discriminator_forward.1} parent=1 // pred_check_branch
      %84 = sbr.rel (0) target = $region37
    $region36: #{discriminator_forward.1} parent=1 // pred_region
      _
    $region37: #{discriminator_forward.1} parent=1 // pred_fallthru
      _
    // Predicated region
    $region38: #{discriminator_forward.1} parent=1 // pred_check
      _
    $region39: #{discriminator_forward.1} parent=1 // pred_check_branch
      %86 = sbr.rel (0) target = $region41
    $region40: #{discriminator_forward.1} parent=1 // pred_region
      _
    $region41: #{discriminator_forward.1} parent=1 // pred_fallthru
      _
    // Predicated region
    $region42: #{discriminator_forward.1} parent=1 // pred_check
      _
    $region43: #{discriminator_forward.1} parent=1 // pred_check_branch
      %88 = sbr.rel (0) target = $region45
    $region44: #{discriminator_forward.1} parent=1 // pred_region
      _
    $region45: #{discriminator_forward.1} parent=1 // pred_fallthru
      _
    // Predicated region
    $region46: #{discriminator_forward.1} parent=1 // pred_check
      _
    $region47: #{discriminator_forward.1} parent=1 // pred_check_branch
      %90 = sbr.rel (0) target = $region49
    $region48: #{discriminator_forward.1} parent=1 // pred_region
      %91 = dma.done [#allocation4], 128
    $region49: #{discriminator_forward.1} parent=1 // pred_fallthru
      _
    // Predicated region
    $region50: #{discriminator_forward.1} parent=1 // pred_check
      _
    $region51: #{discriminator_forward.1} parent=1 // pred_check_branch
      %93 = sbr.rel (0) target = $region53
    $region52: #{discriminator_forward.1} parent=1 // pred_region
      %94 = dma.done [#allocation6], 256
    $region53: #{discriminator_forward.1} parent=1 // pred_fallthru
      _
    // Predicated region
    $region54: #{discriminator_forward.1} parent=1 // pred_check
      _
    $region55: #{discriminator_forward.1} parent=1 // pred_check_branch
      %96 = sbr.rel (0) target = $region57
    $region56: #{discriminator_forward.1} parent=1 // pred_region
      %97 = dma.done [#allocation6], 1216
    $region57: #{discriminator_forward.1} parent=1 // pred_fallthru
      _
    // Predicated region
    $region58: #{discriminator_forward.1} parent=1 // pred_check
      _
    $region59: #{discriminator_forward.1} parent=1 // pred_check_branch
      %99 = sbr.rel (0) target = $region61
    $region60: #{discriminator_forward.1} parent=1 // pred_region
      %100 = dma.done [#allocation9], 1024
    $region61: #{discriminator_forward.1} parent=1 // pred_fallthru
      _
    // Predicated region
    $region62: #{discriminator_forward.1} parent=1 // pred_check
      _
    $region63: #{discriminator_forward.1} parent=1 // pred_check_branch
      %102 = sbr.rel (0) target = $region65
    $region64: #{discriminator_forward.1} parent=1 // pred_region
      %103 = dma.done [#allocation9], 1024
    $region65: #{discriminator_forward.1} parent=1 // pred_fallthru
      _
    %v105 = vld [vmem:[#allocation3] sm:$0xff]
    %v106 = vpack.c.bf16 %v105, %v105
    %v107 = vld [vmem:[#allocation5] sm:$0xff]
    %v108 = vld [vmem:[#allocation5 + $0x8] sm:$0xff]
    %v109 = vpack.c.bf16 %v107, %v107
    %v110 = vpack.c.bf16 %v108, %v108
    %v111 = vld [vmem:[%s2] sm:$0xf]
    %v112 = vld [vmem:[%s2 + $0x4] sm:$0xf]
    %v113 = vld [vmem:[#allocation7] sm:$0xf]
    %v114 = vld [vmem:[#allocation7 + $0x4] sm:$0xf]
    %v115 = vld [vmem:[#allocation7 + $0x8] sm:$0xf]
    %v116 = vld [vmem:[#allocation7 + $0xc] sm:$0xf]
    %v117 = vld [vmem:[#allocation7 + $0x10] sm:$0xf]
    %v118 = vld [vmem:[#allocation7 + $0x14] sm:$0xf]
    %v119 = vld [vmem:[#allocation7 + $0x18] sm:$0xf]
    %v120 = vld [vmem:[#allocation7 + $0x1c] sm:$0xf]
    %v121 = vld [vmem:[#allocation7 + $0x20] sm:$0xf]
    %v122 = vld [vmem:[#allocation7 + $0x24] sm:$0xf]
    %v123 = vld [vmem:[#allocation7 + $0x28] sm:$0xf]
    %v124 = vld [vmem:[#allocation7 + $0x2c] sm:$0xf]
    %v125 = vld [vmem:[#allocation7 + $0x30] sm:$0xf]
    %v126 = vld [vmem:[#allocation7 + $0x34] sm:$0xf]
    %v127 = vld [vmem:[#allocation7 + $0x38] sm:$0xf]
    %v128 = vld [vmem:[#allocation7 + $0x3c] sm:$0xf]
    %v129 = vld [vmem:[#allocation7 + $0x40] sm:$0xf]
    %v130 = vld [vmem:[#allocation7 + $0x44] sm:$0xf]
    %v131 = vld [vmem:[#allocation7 + $0x48] sm:$0x7]
    %v151 = vunpack.c.l.b16 %v113
    %v152 = vunpack.c.l.b16 %v114
    %v153 = vunpack.c.l.b16 %v115
    %v154 = vunpack.c.l.b16 %v116
    %v155 = vunpack.c.l.b16 %v117
    %v156 = vunpack.c.l.b16 %v118
    %v157 = vunpack.c.l.b16 %v119
    %v158 = vunpack.c.l.b16 %v120
    %v159 = vunpack.c.l.b16 %v121
    %v160 = vunpack.c.l.b16 %v122
    %v161 = vunpack.c.l.b16 %v123
    %v162 = vunpack.c.l.b16 %v124
    %v163 = vunpack.c.l.b16 %v125
    %v164 = vunpack.c.l.b16 %v126
    %v165 = vunpack.c.l.b16 %v127
    %v166 = vunpack.c.l.b16 %v128
    %v167 = vunpack.c.l.b16 %v129
    %v168 = vunpack.c.l.b16 %v130
    %v169 = vunpack.c.l.b16 %v131
    %v170 = vpack.c.b16 %v152, %v151
    %v171 = vpack.c.b16 %v154, %v153
    %v172 = vpack.c.b16 %v156, %v155
    %v173 = vpack.c.b16 %v158, %v157
    %v174 = vpack.c.b16 %v160, %v159
    %v175 = vpack.c.b16 %v162, %v161
    %v176 = vpack.c.b16 %v164, %v163
    %v177 = vpack.c.b16 %v166, %v165
    %v178 = vpack.c.b16 %v168, %v167
    %v179 = vpack.c.b16 %v169, %v169
    %vm189 = vcmask 179200
    %v191 = vsel %vm189, %v110, 0
    %vm193 = vcmask 1042432
    %v195 = vsel %vm193, %v179, 0
    %197 = vmatprep.subr.bf16.mxu0 0
    %198 = vmatpush1.bf16.msra.mxu0 %v170
    %199 = vmatprep.subr.bf16.mxu0 0
    %200 = vmatpush1.bf16.msra.mxu0 %v171
    %201 = vmatprep.subr.bf16.mxu0 0
    %202 = vmatpush1.bf16.msra.mxu0 %v172
    %203 = vmatprep.subr.bf16.mxu0 0
    %204 = vmatpush1.bf16.msra.mxu0 %v173
    %205 = vmatprep.subr.bf16.mxu0 0
    %206 = vmatpush1.bf16.msra.mxu0 %v174
    %207 = vmatprep.subr.bf16.mxu0 0
    %208 = vmatpush1.bf16.msra.mxu0 %v175
    %209 = vmatprep.subr.bf16.mxu0 0
    %210 = vmatpush1.bf16.msra.mxu0 %v176
    %211 = vmatprep.subr.bf16.mxu0 0
    %212 = vmatpush1.bf16.msra.mxu0 %v177
    %213 = vmatprep.subr.bf16.mxu0 0
    %214 = vmatpush1.bf16.msra.mxu0 %v178
    %215 = vmatprep.subr.bf16.mxu0 0
    %216 = vmatpush1.bf16.msra.mxu0 %v195
    %217 = vmatprep.subr.bf16.mxu0 0
    %218 = vmatpush1.bf16.msra.mxu0 0
    %219 = vmatprep.subr.bf16.mxu0 0
    %220 = vmatpush1.bf16.msra.mxu0 0
    %221 = vmatprep.subr.bf16.mxu0 0
    %222 = vmatpush1.bf16.msra.mxu0 0
    %223 = vmatprep.subr.bf16.mxu0 0
    %224 = vmatpush1.bf16.msra.mxu0 0
    %225 = vmatprep.subr.bf16.mxu0 0
    %226 = vmatpush1.bf16.msra.mxu0 0
    %227 = vmatprep.subr.bf16.mxu0 0
    %228 = vmatpush1.bf16.msra.mxu0 0
    %229 = vmatprep.mubr.bf16.mxu0 %v191
    %230 = vmatmul.mubr.bf16.gmra.mrb[0].mxu0 %v109
    %v231 = vpop.f32.mrb[0].mxu0
    %v232 = vadd.f32 0.0, %v231
    %v233 = vpop.f32.mrb[0].mxu0
    %v234 = vpop.f32.mrb[0].mxu0
    %v235 = vpop.f32.mrb[0].mxu0
    %236 = vdwg.mxu0
    %v239 = vunpack.c.l.b16 %v111
    %v240 = vunpack.c.l.b16 %v112
    %v241 = vpack.c.b16 %v240, %v239
    %vm242 = vcmask 121856
    %v244 = vsel %vm242, %v106, 0
    %vm246 = vcmask 1046528
    %vm247 = vcmask 1047552
    %v248 = vsel %vm246, 4294967295, 65535
    %v249 = vsel %vm247, %v248, 0
    %v251 = vand.u32 %v241, %v249
    %253 = vmatprep.subr.bf16.mxu0 0
    %254 = vmatpush1.bf16.msra.mxu0 %v251
    %255 = vmatprep.subr.bf16.mxu0 0
    %256 = vmatpush1.bf16.msra.mxu0 0
    %257 = vmatprep.subr.bf16.mxu0 0
    %258 = vmatpush1.bf16.msra.mxu0 0
    %259 = vmatprep.subr.bf16.mxu0 0
    %260 = vmatpush1.bf16.msra.mxu0 0
    %261 = vmatprep.subr.bf16.mxu0 0
    %262 = vmatpush1.bf16.msra.mxu0 0
    %263 = vmatprep.subr.bf16.mxu0 0
    %264 = vmatpush1.bf16.msra.mxu0 0
    %265 = vmatprep.subr.bf16.mxu0 0
    %266 = vmatpush1.bf16.msra.mxu0 0
    %267 = vmatprep.subr.bf16.mxu0 0
    %268 = vmatpush1.bf16.msra.mxu0 0
    %269 = vmatprep.subr.bf16.mxu0 0
    %270 = vmatpush1.bf16.msra.mxu0 0
    %271 = vmatprep.subr.bf16.mxu0 0
    %272 = vmatpush1.bf16.msra.mxu0 0
    %273 = vmatprep.subr.bf16.mxu0 0
    %274 = vmatpush1.bf16.msra.mxu0 0
    %275 = vmatprep.subr.bf16.mxu0 0
    %276 = vmatpush1.bf16.msra.mxu0 0
    %277 = vmatprep.subr.bf16.mxu0 0
    %278 = vmatpush1.bf16.msra.mxu0 0
    %279 = vmatprep.subr.bf16.mxu0 0
    %280 = vmatpush1.bf16.msra.mxu0 0
    %281 = vmatprep.subr.bf16.mxu0 0
    %282 = vmatpush1.bf16.msra.mxu0 0
    %283 = vmatprep.subr.bf16.mxu0 0
    %284 = vmatpush1.bf16.msra.mxu0 0
    %285 = vmatprep.mubr.bf16.mxu0 0
    %286 = vmatmul.mubr.bf16.gmra.mrb[0].mxu0 %v244
    %v287 = vpop.f32.mrb[0].mxu0
    %v288 = vadd.f32 %v232, %v287
    %v289 = vpop.f32.mrb[0].mxu0
    %v290 = vpop.f32.mrb[0].mxu0
    %v291 = vpop.f32.mrb[0].mxu0
    %292 = vdwg.mxu0
    %v293 = vld [vmem:[%s4] sm:$0x1]
    %v295 = vlaneseq
    %v296 = vshrl.u32 %v295, 7
    %v297 = vsub.s32 0, %v296
    %v298 = vrot.slane %v293, %v297
    %v300 = vadd.f32 %v288, %v298
    %v301 = vmax.f32 %v300, 0.0
    %v302 = vpack.c.bf16 %v301, %v301
    %v303 = vld [vmem:[#allocation8] sm:$0xf]
    %v304 = vld [vmem:[#allocation8 + $0x4] sm:$0xf]
    %v305 = vld [vmem:[#allocation8 + $0x8] sm:$0xf]
    %v306 = vld [vmem:[#allocation8 + $0xc] sm:$0xf]
    %v307 = vld [vmem:[#allocation8 + $0x10] sm:$0xf]
    %v308 = vld [vmem:[#allocation8 + $0x14] sm:$0xf]
    %v309 = vld [vmem:[#allocation8 + $0x18] sm:$0xf]
    %v310 = vld [vmem:[#allocation8 + $0x1c] sm:$0xf]
    %v311 = vld [vmem:[#allocation8 + $0x20] sm:$0xf]
    %v312 = vld [vmem:[#allocation8 + $0x24] sm:$0xf]
    %v313 = vld [vmem:[#allocation8 + $0x28] sm:$0xf]
    %v314 = vld [vmem:[#allocation8 + $0x2c] sm:$0xf]
    %v315 = vld [vmem:[#allocation8 + $0x30] sm:$0xf]
    %v316 = vld [vmem:[#allocation8 + $0x34] sm:$0xf]
    %v317 = vld [vmem:[#allocation8 + $0x38] sm:$0xf]
    %v318 = vld [vmem:[#allocation8 + $0x3c] sm:$0xf]
    %v319 = vld [vmem:[%s6] sm:$0x1]
    %v321 = vlaneseq
    %v322 = vshrl.u32 %v321, 7
    %v323 = vsub.s32 0, %v322
    %v324 = vrot.slane %v319, %v323
    %v342 = vunpack.c.l.b16 %v303
    %v343 = vunpack.c.l.b16 %v304
    %v344 = vunpack.c.l.b16 %v305
    %v345 = vunpack.c.l.b16 %v306
    %v346 = vunpack.c.l.b16 %v307
    %v347 = vunpack.c.l.b16 %v308
    %v348 = vunpack.c.l.b16 %v309
    %v349 = vunpack.c.l.b16 %v310
    %v350 = vunpack.c.l.b16 %v311
    %v351 = vunpack.c.l.b16 %v312
    %v352 = vunpack.c.l.b16 %v313
    %v353 = vunpack.c.l.b16 %v314
    %v354 = vunpack.c.l.b16 %v315
    %v355 = vunpack.c.l.b16 %v316
    %v356 = vunpack.c.l.b16 %v317
    %v357 = vunpack.c.l.b16 %v318
    %v358 = vpack.c.b16 %v343, %v342
    %v359 = vpack.c.b16 %v345, %v344
    %v360 = vpack.c.b16 %v347, %v346
    %v361 = vpack.c.b16 %v349, %v348
    %v362 = vpack.c.b16 %v351, %v350
    %v363 = vpack.c.b16 %v353, %v352
    %v364 = vpack.c.b16 %v355, %v354
    %v365 = vpack.c.b16 %v357, %v356
    %374 = vmatprep.subr.bf16.mxu0 0
    %375 = vmatpush1.bf16.msra.mxu0 %v358
    %376 = vmatprep.subr.bf16.mxu0 0
    %377 = vmatpush1.bf16.msra.mxu0 %v359
    %378 = vmatprep.subr.bf16.mxu0 0
    %379 = vmatpush1.bf16.msra.mxu0 %v360
    %380 = vmatprep.subr.bf16.mxu0 0
    %381 = vmatpush1.bf16.msra.mxu0 %v361
    %382 = vmatprep.subr.bf16.mxu0 0
    %383 = vmatpush1.bf16.msra.mxu0 %v362
    %384 = vmatprep.subr.bf16.mxu0 0
    %385 = vmatpush1.bf16.msra.mxu0 %v363
    %386 = vmatprep.subr.bf16.mxu0 0
    %387 = vmatpush1.bf16.msra.mxu0 %v364
    %388 = vmatprep.subr.bf16.mxu0 0
    %389 = vmatpush1.bf16.msra.mxu0 %v365
    %390 = vmatprep.subr.bf16.mxu0 0
    %391 = vmatpush1.bf16.msra.mxu0 0
    %392 = vmatprep.subr.bf16.mxu0 0
    %393 = vmatpush1.bf16.msra.mxu0 0
    %394 = vmatprep.subr.bf16.mxu0 0
    %395 = vmatpush1.bf16.msra.mxu0 0
    %396 = vmatprep.subr.bf16.mxu0 0
    %397 = vmatpush1.bf16.msra.mxu0 0
    %398 = vmatprep.subr.bf16.mxu0 0
    %399 = vmatpush1.bf16.msra.mxu0 0
    %400 = vmatprep.subr.bf16.mxu0 0
    %401 = vmatpush1.bf16.msra.mxu0 0
    %402 = vmatprep.subr.bf16.mxu0 0
    %403 = vmatpush1.bf16.msra.mxu0 0
    %404 = vmatprep.subr.bf16.mxu0 0
    %405 = vmatpush1.bf16.msra.mxu0 0
    %406 = vmatprep.mubr.bf16.mxu0 0
    %407 = vmatmul.mubr.bf16.gmra.mrb[0].mxu0 %v302
    %v408 = vpop.f32.mrb[0].mxu0
    %v409 = vadd.f32 %v324, %v408
    %v410 = vpop.f32.mrb[0].mxu0
    %v411 = vpop.f32.mrb[0].mxu0
    %v412 = vpop.f32.mrb[0].mxu0
    %413 = vdwg.mxu0
    %v414 = vmax.f32 %v409, 0.0
    %v415 = vpack.c.bf16 %v414, %v414
    %v416 = vld [vmem:[#allocation10] sm:$0xf]
    %v417 = vld [vmem:[#allocation10 + $0x4] sm:$0xf]
    %v418 = vld [vmem:[#allocation10 + $0x8] sm:$0xf]
    %v419 = vld [vmem:[#allocation10 + $0xc] sm:$0xf]
    %v420 = vld [vmem:[#allocation10 + $0x10] sm:$0xf]
    %v421 = vld [vmem:[#allocation10 + $0x14] sm:$0xf]
    %v422 = vld [vmem:[#allocation10 + $0x18] sm:$0xf]
    %v423 = vld [vmem:[#allocation10 + $0x1c] sm:$0xf]
    %v424 = vld [vmem:[#allocation10 + $0x20] sm:$0xf]
    %v425 = vld [vmem:[#allocation10 + $0x24] sm:$0xf]
    %v426 = vld [vmem:[#allocation10 + $0x28] sm:$0xf]
    %v427 = vld [vmem:[#allocation10 + $0x2c] sm:$0xf]
    %v428 = vld [vmem:[#allocation10 + $0x30] sm:$0xf]
    %v429 = vld [vmem:[#allocation10 + $0x34] sm:$0xf]
    %v430 = vld [vmem:[#allocation10 + $0x38] sm:$0xf]
    %v431 = vld [vmem:[#allocation10 + $0x3c] sm:$0xf]
    %v432 = vld [vmem:[%s8] sm:$0x1]
    %v434 = vlaneseq
    %v435 = vshrl.u32 %v434, 7
    %v436 = vsub.s32 0, %v435
    %v437 = vrot.slane %v432, %v436
    %v455 = vunpack.c.l.b16 %v416
    %v456 = vunpack.c.l.b16 %v417
    %v457 = vunpack.c.l.b16 %v418
    %v458 = vunpack.c.l.b16 %v419
    %v459 = vunpack.c.l.b16 %v420
    %v460 = vunpack.c.l.b16 %v421
    %v461 = vunpack.c.l.b16 %v422
    %v462 = vunpack.c.l.b16 %v423
    %v463 = vunpack.c.l.b16 %v424
    %v464 = vunpack.c.l.b16 %v425
    %v465 = vunpack.c.l.b16 %v426
    %v466 = vunpack.c.l.b16 %v427
    %v467 = vunpack.c.l.b16 %v428
    %v468 = vunpack.c.l.b16 %v429
    %v469 = vunpack.c.l.b16 %v430
    %v470 = vunpack.c.l.b16 %v431
    %v471 = vpack.c.b16 %v456, %v455
    %v472 = vpack.c.b16 %v458, %v457
    %v473 = vpack.c.b16 %v460, %v459
    %v474 = vpack.c.b16 %v462, %v461
    %v475 = vpack.c.b16 %v464, %v463
    %v476 = vpack.c.b16 %v466, %v465
    %v477 = vpack.c.b16 %v468, %v467
    %v478 = vpack.c.b16 %v470, %v469
    %487 = vmatprep.subr.bf16.mxu0 0
    %488 = vmatpush1.bf16.msra.mxu0 %v471
    %489 = vmatprep.subr.bf16.mxu0 0
    %490 = vmatpush1.bf16.msra.mxu0 %v472
    %491 = vmatprep.subr.bf16.mxu0 0
    %492 = vmatpush1.bf16.msra.mxu0 %v473
    %493 = vmatprep.subr.bf16.mxu0 0
    %494 = vmatpush1.bf16.msra.mxu0 %v474
    %495 = vmatprep.subr.bf16.mxu0 0
    %496 = vmatpush1.bf16.msra.mxu0 %v475
    %497 = vmatprep.subr.bf16.mxu0 0
    %498 = vmatpush1.bf16.msra.mxu0 %v476
    %499 = vmatprep.subr.bf16.mxu0 0
    %500 = vmatpush1.bf16.msra.mxu0 %v477
    %501 = vmatprep.subr.bf16.mxu0 0
    %502 = vmatpush1.bf16.msra.mxu0 %v478
    %503 = vmatprep.subr.bf16.mxu0 0
    %504 = vmatpush1.bf16.msra.mxu0 0
    %505 = vmatprep.subr.bf16.mxu0 0
    %506 = vmatpush1.bf16.msra.mxu0 0
    %507 = vmatprep.subr.bf16.mxu0 0
    %508 = vmatpush1.bf16.msra.mxu0 0
    %509 = vmatprep.subr.bf16.mxu0 0
    %510 = vmatpush1.bf16.msra.mxu0 0
    %511 = vmatprep.subr.bf16.mxu0 0
    %512 = vmatpush1.bf16.msra.mxu0 0
    %513 = vmatprep.subr.bf16.mxu0 0
    %514 = vmatpush1.bf16.msra.mxu0 0
    %515 = vmatprep.subr.bf16.mxu0 0
    %516 = vmatpush1.bf16.msra.mxu0 0
    %517 = vmatprep.subr.bf16.mxu0 0
    %518 = vmatpush1.bf16.msra.mxu0 0
    %519 = vmatprep.mubr.bf16.mxu0 0
    %520 = vmatmul.mubr.bf16.gmra.mrb[0].mxu0 %v415
    %v521 = vpop.f32.mrb[0].mxu0
    %v522 = vadd.f32 %v437, %v521
    %v523 = vpop.f32.mrb[0].mxu0
    %v524 = vpop.f32.mrb[0].mxu0
    %v525 = vpop.f32.mrb[0].mxu0
    %526 = vdwg.mxu0
    %v527 = vmax.f32 %v522, 0.0
    %v528 = vld [vmem:[%s9] sm:$0x1]
    %v530 = vlaneseq
    %v531 = vshrl.u32 %v530, 7
    %v532 = vsub.s32 0, %v531
    %v533 = vrot.slane %v528, %v532
    %v535 = vmul.f32 %v527, %v533
    %536 = vadd.xlane.f32.xlu0 %v535
    %v537 = vpop.xlane.xlu0 %536
    %v538 = vld [vmem:[#allocation2] sm:$0x1]
    %v540 = vlaneseq
    %v541 = vshrl.u32 %v540, 7
    %v542 = vsub.s32 0, %v541
    %v543 = vrot.slane %v538, %v542
    %v545 = vadd.f32 %v537, %v543
    %v546 = vxor.u32 %v545, 2147483648
    %v547 = vmul.f32 %v546, 1.442695
    %v548 = vpow.pop %v547
    %v549 = vadd.f32 %v548, 1.0
    %v550 = vrcp.pop %v549
    %v551 = vmul.f32 1.0, %v550
    %vm552 = vcmask 7168
    %553 = vst.msk [vmem:[%s11] sm:$0xff] %vm552, %v551
    // Predicated region
    $region66: #{discriminator_forward.1} parent=1 // pred_check
      _
    $region67: #{discriminator_forward.1} parent=1 // pred_check_branch
      %555 = sbr.rel (0) target = $region69
    $region68: #{discriminator_forward.1} parent=1 // pred_region
      _
    $region69: #{discriminator_forward.1} parent=1 // pred_fallthru
      _
    // Predicated region
    $region70: #{discriminator_forward.1} parent=1 // pred_check
      _
    $region71: #{discriminator_forward.1} parent=1 // pred_check_branch
      %557 = sbr.rel (0) target = $region73
    $region72: #{discriminator_forward.1} parent=1 // pred_region
      _
    $region73: #{discriminator_forward.1} parent=1 // pred_fallthru
      _
    %558 = vsyncpa [#allocation4], 1
    %559 = vsyncpa [#allocation6], 1
    %560 = vsyncpa [#allocation9], 1

</llo_original>
